<compile_context>
chip_gen: v5e
topology: v5e:2x2
jax: 0.10.0
libtpu: 0.0.40
codegen_flags: <defaults>
</compile_context>

<pallas_src>
import numpy as np
import jax
import jax.numpy as jnp
from jax.experimental import pallas as pl
from jax.experimental.pallas import tpu as pltpu


def critic_kernel(x_ref, w1_ref, b1_ref, w2_ref, b2_ref, out_ref):
    # Layer 1 on the MXU, f32 accumulation: (TB, IN) @ (IN, H) -> (TB, H).
    dense = jnp.dot(x_ref[...], w1_ref[...], preferred_element_type=jnp.float32)
    dense = jnp.maximum(dense + b1_ref[...], 0.0)
    # Layer 2 (out_features == 1): contract w2-row and dense on H (q@k^T pattern) so
    # the result is already the lane-dense row (1, TB) -- no (TB, 1) column, no masked
    # stores, no sublane->lane relayout.
    value = jax.lax.dot_general(
        w2_ref[...], dense,
        dimension_numbers=(((1,), (1,)), ((), ())),
        preferred_element_type=jnp.float32)                 # (1, TB)
    out_ref[...] = (value + b2_ref[0]).reshape(out_ref.shape)


def _round_up(x, m):
    return (x + m - 1) // m * m


def init_params(key, hidden_size):
    """Synthetic parameters with the same shapes as torch's Critic(hidden_size)."""
    in_dim = 32 + 2 * hidden_size

    def linear(k, fan_in, fan_out):
        kw, kb = jax.random.split(k)
        bound = 1.0 / np.sqrt(fan_in)
        # stored as (in, out) so the kernel computes x @ W + b
        w = jax.random.uniform(kw, (fan_in, fan_out), jnp.float32, -bound, bound)
        b = jax.random.uniform(kb, (1, fan_out), jnp.float32, -bound, bound)
        return w, b

    k1, k2 = jax.random.split(key)
    w1, b1 = linear(k1, in_dim, hidden_size)   # l1
    w2, b2 = linear(k2, hidden_size, 1)        # l2
    return w1, b1, w2, b2


def critic_forward(concat_layer, params, *, block_b=1024,
                   activation_dtype=jnp.bfloat16):
    w1, b1, w2, b2 = params
    B, in_dim = concat_layer.shape
    H = w1.shape[1]

    # ---- batch tile selection (multiple of 128 keeps the output row lane-dense) ----
    block_b = max(128, _round_up(block_b, 128))
    if B <= block_b:
        TB = _round_up(B, 128)                       # small batch: one fat step
    else:
        # big batch: block_b rows/step, but keep >=4 steps (v7x dual-TC + pipelining)
        TB = min(block_b, max(512, _round_up(pl.cdiv(B, 4), 128)))
    nt = pl.cdiv(B, TB)     # ragged final block handled by bounds-checked DMA (no pad)

    x = concat_layer.astype(activation_dtype)        # bf16 halves dominant HBM traffic
    w1c = w1.astype(activation_dtype)
    b1r = b1.reshape(1, H).astype(jnp.float32)       # elementwise path stays f32
    w2r = w2.reshape(1, H).astype(jnp.float32)       # (H, 1) -> (1, H) row
    b2s = b2.reshape(1).astype(jnp.float32)          # SMEM scalar

    resident = lambda i: (0, 0)   # constant block index -> stays VMEM-resident

    out = pl.pallas_call(
        critic_kernel,
        out_shape=jax.ShapeDtypeStruct((nt, 1, TB), jnp.float32),
        grid_spec=pltpu.PrefetchScalarGridSpec(
            num_scalar_prefetch=0,
            grid=(nt,),
            in_specs=[
                pl.BlockSpec((TB, in_dim), lambda i: (i, 0)),       # activations (pipelined)
                pl.BlockSpec((in_dim, H), resident),                # W1
                pl.BlockSpec((1, H), resident),                     # b1
                pl.BlockSpec((1, H), resident),                     # w2 row
                pl.BlockSpec(memory_space=pltpu.MemorySpace.SMEM),  # b2 scalar
            ],
            out_specs=pl.BlockSpec((1, 1, TB), lambda i: (i, 0, 0)),
        ),
        compiler_params=pltpu.CompilerParams(
            dimension_semantics=("parallel",)),                     # megacore on v7x
    )(x, w1c, b1r, w2r, b2s)

    # torch's value.reshape(-1); drop the garbage tail of the final partial tile.
    return out.reshape(-1)[:B]


def reference_forward(concat_layer, params):
    w1, b1, w2, b2 = params
    hp = jax.lax.Precision.HIGHEST
    dense = jax.nn.relu(jnp.dot(concat_layer, w1, precision=hp) + b1)
    value = jnp.dot(dense, w2, precision=hp) + b2
    return value.reshape(-1)


if __name__ == "__main__":
    hidden_size = 32
    in_dim = 32 + 2 * hidden_size          # 96

    key = jax.random.PRNGKey(0)
    kp, kx1, kx2 = jax.random.split(key, 3)
    params = init_params(kp, hidden_size)

    # Case 1: default perf path (bf16 activations, single 512-row tile).
    x1 = jax.random.normal(kx1, (512, in_dim), jnp.float32)
    out_bf16 = jax.block_until_ready(critic_forward(x1, params))
    ref1 = reference_forward(x1, params)
    assert out_bf16.shape == (512,)
    np.testing.assert_allclose(np.asarray(out_bf16), np.asarray(ref1),
                               rtol=5e-2, atol=5e-2)

    # Case 2: f32 parity path (same kernel, no bf16 cast).
    out_f32 = jax.block_until_ready(
        critic_forward(x1, params, activation_dtype=jnp.float32))
    np.testing.assert_allclose(np.asarray(out_f32), np.asarray(ref1),
                               rtol=1e-2, atol=1e-2)

    # Case 3: ragged batch + multi-step grid, no jnp.pad of the input.
    x2 = jax.random.normal(kx2, (700, in_dim), jnp.float32)
    out_ragged = jax.block_until_ready(
        critic_forward(x2, params, block_b=256, activation_dtype=jnp.float32))
    ref2 = reference_forward(x2, params)
    assert out_ragged.shape == (700,)
    np.testing.assert_allclose(np.asarray(out_ragged), np.asarray(ref2),
                               rtol=1e-2, atol=1e-2)

    print("KERNEL_OK")
</pallas_src>

<mosaic_0001>
module attributes {stable_mosaic.version = 11 : i64} {
  func.func @critic_kernel(%arg0: i32, %arg1: memref<512x96xbf16, #tpu.memory_space<vmem>>, %arg2: memref<96x32xbf16, #tpu.memory_space<vmem>>, %arg3: memref<1x32xf32, #tpu.memory_space<vmem>>, %arg4: memref<1x32xf32, #tpu.memory_space<vmem>>, %arg5: memref<1xf32, #tpu.memory_space<smem>>, %arg6: memref<1x1x512xf32, #tpu.memory_space<vmem>>) attributes {dimension_semantics = [#tpu.dimension_semantics<parallel>], iteration_bounds = array<i64: 1>, scalar_prefetch = 0 : i64, scratch_operands = 0 : i64, tpu.core_type = #tpu.core_type<tc>, window_params = [{transform_indices = @transform_0, window_bounds = array<i64: 512, 96>}, {pipeline_mode = #tpu.pipeline_mode<synchronous>, transform_indices = @transform_1, window_bounds = array<i64: 96, 32>}, {pipeline_mode = #tpu.pipeline_mode<synchronous>, transform_indices = @transform_2, window_bounds = array<i64: 1, 32>}, {pipeline_mode = #tpu.pipeline_mode<synchronous>, transform_indices = @transform_3, window_bounds = array<i64: 1, 32>}, {transform_indices = @transform_4, window_bounds = array<i64: 1>}, {transform_indices = @transform_5, window_bounds = array<i64: 1, 1, 512>}]} {
    %c0 = arith.constant 0 : index
    %c0_0 = arith.constant 0 : index
    %0 = vector.load %arg1[%c0, %c0_0] : memref<512x96xbf16, #tpu.memory_space<vmem>>, vector<512x96xbf16>
    %c0_1 = arith.constant 0 : index
    %c0_2 = arith.constant 0 : index
    %1 = vector.load %arg2[%c0_1, %c0_2] : memref<96x32xbf16, #tpu.memory_space<vmem>>, vector<96x32xbf16>
    %cst = arith.constant dense<0.000000e+00> : vector<512x32xf32>
    %2 = tpu.matmul %0, %1, %cst {dimension_numbers = #tpu.dot_dimension_numbers<[1], [0], [0], [1], [0, 0, 1, 1], [], []>} : vector<512x96xbf16>, vector<96x32xbf16>, vector<512x32xf32> -> vector<512x32xf32>
    %c0_3 = arith.constant 0 : index
    %c0_4 = arith.constant 0 : index
    %3 = vector.load %arg3[%c0_3, %c0_4] : memref<1x32xf32, #tpu.memory_space<vmem>>, vector<1x32xf32>
    %4 = vector.broadcast %3 : vector<1x32xf32> to vector<512x32xf32>
    %5 = arith.addf %2, %4 : vector<512x32xf32>
    %cst_5 = arith.constant 0.000000e+00 : f32
    %6 = vector.broadcast %cst_5 : f32 to vector<512x32xf32>
    %7 = arith.maximumf %5, %6 : vector<512x32xf32>
    %c0_6 = arith.constant 0 : index
    %c0_7 = arith.constant 0 : index
    %8 = vector.load %arg4[%c0_6, %c0_7] : memref<1x32xf32, #tpu.memory_space<vmem>>, vector<1x32xf32>
    %cst_8 = arith.constant dense<0.000000e+00> : vector<1x512xf32>
    %9 = tpu.matmul %8, %7, %cst_8 {dimension_numbers = #tpu.dot_dimension_numbers<[1], [1], [0], [0], [0, 0, 1, 0], [], []>} : vector<1x32xf32>, vector<512x32xf32>, vector<1x512xf32> -> vector<1x512xf32>
    %c0_9 = arith.constant 0 : index
    %10 = memref.load %arg5[%c0_9] : memref<1xf32, #tpu.memory_space<smem>>
    %11 = vector.broadcast %10 : f32 to vector<1x512xf32>
    %12 = arith.addf %9, %11 : vector<1x512xf32>
    %13 = vector.shape_cast %12 : vector<1x512xf32> to vector<1x1x512xf32>
    %c0_10 = arith.constant 0 : index
    %c0_11 = arith.constant 0 : index
    %c0_12 = arith.constant 0 : index
    %14 = vector.load %arg6[%c0_10, %c0_11, %c0_12] : memref<1x1x512xf32, #tpu.memory_space<vmem>>, vector<1x1x512xf32>
    tpu.vector_store %arg6[%c0_10, %c0_11, %c0_12], %13 {strides = array<i32>} : memref<1x1x512xf32, #tpu.memory_space<vmem>>, vector<1x1x512xf32>,
    return
  }
  func.func @transform_0(%arg0: i32) -> (i32, i32) {
    %c0_i32 = arith.constant 0 : i32
    %c0_i32_0 = arith.constant 0 : i32
    return %arg0, %c0_i32 : i32, i32
  }
  func.func @transform_1(%arg0: i32) -> (i32, i32) {
    %c0_i32 = arith.constant 0 : i32
    %c0_i32_0 = arith.constant 0 : i32
    %c0_i32_1 = arith.constant 0 : i32
    return %c0_i32, %c0_i32_0 : i32, i32
  }
  func.func @transform_2(%arg0: i32) -> (i32, i32) {
    %c0_i32 = arith.constant 0 : i32
    %c0_i32_0 = arith.constant 0 : i32
    %c0_i32_1 = arith.constant 0 : i32
    return %c0_i32, %c0_i32_0 : i32, i32
  }
  func.func @transform_3(%arg0: i32) -> (i32, i32) {
    %c0_i32 = arith.constant 0 : i32
    %c0_i32_0 = arith.constant 0 : i32
    %c0_i32_1 = arith.constant 0 : i32
    return %c0_i32, %c0_i32_0 : i32, i32
  }
  func.func @transform_4(%arg0: i32) -> i32 {
    %c0_i32 = arith.constant 0 : i32
    %c0_i32_0 = arith.constant 0 : i32
    return %c0_i32 : i32
  }
  func.func @transform_5(%arg0: i32) -> (i32, i32, i32) {
    %c0_i32 = arith.constant 0 : i32
    %c0_i32_0 = arith.constant 0 : i32
    %c0_i32_1 = arith.constant 0 : i32
    return %arg0, %c0_i32, %c0_i32_0 : i32, i32, i32
  }
}

</mosaic_0001>

<llo_original>
// kernel: tpu_custom_call.1
$region0: #{tpu_custom_call.1}
  #allocation0 [shape = 'u32[]', space=smem, size = 0x4, offset = 0x4, fixed_abs, tag = 'smem constant byte address 0x4 - core index']
  #allocation1 [shape = 'u32[72,128]{1,0:T(1,128)}', space=vmem, size = 0x9000, scoped, tag = 'internal scratch']
  #allocation2 [shape = 'f32[1]{0:T(128)S(6)}', space=smem, size = 0x200, scoped, tag = 'scoped memory for tpu_custom_call.1']
  %s0 = inlined_call_operand.vmem [shape: bf16[512,96], index: 0, kind: input, shape index: {}]
  %s1 = inlined_call_operand.vmem [shape: bf16[96,32], index: 1, kind: input, shape index: {}]
  %s2 = inlined_call_operand.vmem [shape: f32[1,32], index: 2, kind: input, shape index: {}]
  %s3 = inlined_call_operand.vmem [shape: f32[1,32], index: 3, kind: input, shape index: {}]
  %s4 = inlined_call_operand.<no memory space> [shape: f32[1], index: 4, kind: input, shape index: {}]
  %s5 = inlined_call_operand.hbm [shape: f32[1,1,512], index: 5, kind: output, shape index: {}]
  %s6 = sld [smem:[#allocation0]]
  $region30: #{tpu_custom_call.1} parent=0
    _
  %s8 = ssub.s32 1, %s6
  %s9 = scalar_select 0, %s8, %s6
  %10 = sst [smem:[#allocation2]] %s4
  $region1: #{tpu_custom_call.1} parent=0
    #allocation3 [shape = 'u8[2048]{0}', space=vmem, size = 0x800, scoped, tag = 'output window, operand 0, single buffered']
    #allocation4 [shape = 's32[1]{0}', space=sflag, size = 0x4, scoped, tag = 'scoped memory for tpu_custom_call.1']
    %11 = vsyncpa [#allocation4], 0
    // Predicated region
    $region2: #{tpu_custom_call.1} parent=1 // pred_check
      _
    $region3: #{tpu_custom_call.1} parent=1 // pred_check_branch
      %13 = sbr.rel (0) target = $region5
    $region4: #{tpu_custom_call.1} parent=1 // pred_region
      _
    $region5: #{tpu_custom_call.1} parent=1 // pred_fallthru
      _
    // Predicated region
    $region6: #{tpu_custom_call.1} parent=1 // pred_check
      _
    $region7: #{tpu_custom_call.1} parent=1 // pred_check_branch
      %15 = sbr.rel (0) target = $region9
    $region8: #{tpu_custom_call.1} parent=1 // pred_region
      _
    $region9: #{tpu_custom_call.1} parent=1 // pred_fallthru
      _
    // Predicated region
    $region10: #{tpu_custom_call.1} parent=1 // pred_check
      _
    $region11: #{tpu_custom_call.1} parent=1 // pred_check_branch
      %17 = sbr.rel (0) target = $region13
    $region12: #{tpu_custom_call.1} parent=1 // pred_region
      _
    $region13: #{tpu_custom_call.1} parent=1 // pred_fallthru
      _
    // Predicated region
    $region14: #{tpu_custom_call.1} parent=1 // pred_check
      _
    $region15: #{tpu_custom_call.1} parent=1 // pred_check_branch
      %19 = sbr.rel (0) target = $region17
    $region16: #{tpu_custom_call.1} parent=1 // pred_region
      _
    $region17: #{tpu_custom_call.1} parent=1 // pred_fallthru
      _
    // Predicated region
    $region18: #{tpu_custom_call.1} parent=1 // pred_check
      _
    $region19: #{tpu_custom_call.1} parent=1 // pred_check_branch
      %21 = sbr.rel (0) target = $region21
    $region20: #{tpu_custom_call.1} parent=1 // pred_region
      _
    $region21: #{tpu_custom_call.1} parent=1 // pred_fallthru
      _
    %v23 = vld [vmem:[%s0] sm:$0xf]
    %v24 = vld [vmem:[%s0 + $0x4] sm:$0xf]
    %v25 = vld [vmem:[%s0 + $0x8] sm:$0xf]
    %v26 = vld [vmem:[%s0 + $0xc] sm:$0xf]
    %v27 = vld [vmem:[%s0 + $0x10] sm:$0xf]
    %v28 = vld [vmem:[%s0 + $0x14] sm:$0xf]
    %v29 = vld [vmem:[%s0 + $0x18] sm:$0xf]
    %v30 = vld [vmem:[%s0 + $0x1c] sm:$0xf]
    %v31 = vld [vmem:[%s0 + $0x20] sm:$0xf]
    %v32 = vld [vmem:[%s0 + $0x24] sm:$0xf]
    %v33 = vld [vmem:[%s0 + $0x28] sm:$0xf]
    %v34 = vld [vmem:[%s0 + $0x2c] sm:$0xf]
    %v35 = vld [vmem:[%s0 + $0x30] sm:$0xf]
    %v36 = vld [vmem:[%s0 + $0x34] sm:$0xf]
    %v37 = vld [vmem:[%s0 + $0x38] sm:$0xf]
    %v38 = vld [vmem:[%s0 + $0x3c] sm:$0xf]
    %v39 = vld [vmem:[%s0 + $0x40] sm:$0xf]
    %v40 = vld [vmem:[%s0 + $0x44] sm:$0xf]
    %v41 = vld [vmem:[%s0 + $0x48] sm:$0xf]
    %v42 = vld [vmem:[%s0 + $0x4c] sm:$0xf]
    %v43 = vld [vmem:[%s0 + $0x50] sm:$0xf]
    %v44 = vld [vmem:[%s0 + $0x54] sm:$0xf]
    %v45 = vld [vmem:[%s0 + $0x58] sm:$0xf]
    %v46 = vld [vmem:[%s0 + $0x5c] sm:$0xf]
    %v47 = vld [vmem:[%s0 + $0x60] sm:$0xf]
    %v48 = vld [vmem:[%s0 + $0x64] sm:$0xf]
    %v49 = vld [vmem:[%s0 + $0x68] sm:$0xf]
    %v50 = vld [vmem:[%s0 + $0x6c] sm:$0xf]
    %v51 = vld [vmem:[%s0 + $0x70] sm:$0xf]
    %v52 = vld [vmem:[%s0 + $0x74] sm:$0xf]
    %v53 = vld [vmem:[%s0 + $0x78] sm:$0xf]
    %v54 = vld [vmem:[%s0 + $0x7c] sm:$0xf]
    %v55 = vld [vmem:[%s0 + $0x80] sm:$0xf]
    %v56 = vld [vmem:[%s0 + $0x84] sm:$0xf]
    %v57 = vld [vmem:[%s0 + $0x88] sm:$0xf]
    %v58 = vld [vmem:[%s0 + $0x8c] sm:$0xf]
    %v59 = vld [vmem:[%s0 + $0x90] sm:$0xf]
    %v60 = vld [vmem:[%s0 + $0x94] sm:$0xf]
    %v61 = vld [vmem:[%s0 + $0x98] sm:$0xf]
    %v62 = vld [vmem:[%s0 + $0x9c] sm:$0xf]
    %v63 = vld [vmem:[%s0 + $0xa0] sm:$0xf]
    %v64 = vld [vmem:[%s0 + $0xa4] sm:$0xf]
    %v65 = vld [vmem:[%s0 + $0xa8] sm:$0xf]
    %v66 = vld [vmem:[%s0 + $0xac] sm:$0xf]
    %v67 = vld [vmem:[%s0 + $0xb0] sm:$0xf]
    %v68 = vld [vmem:[%s0 + $0xb4] sm:$0xf]
    %v69 = vld [vmem:[%s0 + $0xb8] sm:$0xf]
    %v70 = vld [vmem:[%s0 + $0xbc] sm:$0xf]
    %v71 = vld [vmem:[%s0 + $0xc0] sm:$0xf]
    %v72 = vld [vmem:[%s0 + $0xc4] sm:$0xf]
    %v73 = vld [vmem:[%s0 + $0xc8] sm:$0xf]
    %v74 = vld [vmem:[%s0 + $0xcc] sm:$0xf]
    %v75 = vld [vmem:[%s0 + $0xd0] sm:$0xf]
    %v76 = vld [vmem:[%s0 + $0xd4] sm:$0xf]
    %v77 = vld [vmem:[%s0 + $0xd8] sm:$0xf]
    %v78 = vld [vmem:[%s0 + $0xdc] sm:$0xf]
    %v79 = vld [vmem:[%s0 + $0xe0] sm:$0xf]
    %v80 = vld [vmem:[%s0 + $0xe4] sm:$0xf]
    %v81 = vld [vmem:[%s0 + $0xe8] sm:$0xf]
    %v82 = vld [vmem:[%s0 + $0xec] sm:$0xf]
    %v83 = vld [vmem:[%s0 + $0xf0] sm:$0xf]
    %v84 = vld [vmem:[%s0 + $0xf4] sm:$0xf]
    %v85 = vld [vmem:[%s0 + $0xf8] sm:$0xf]
    %v86 = vld [vmem:[%s0 + $0xfc] sm:$0xf]
    %v87 = vld [vmem:[%s1] sm:$0xf]
    %v88 = vld [vmem:[%s1 + $0x4] sm:$0xf]
    %v89 = vld [vmem:[%s1 + $0x8] sm:$0xf]
    %v90 = vld [vmem:[%s1 + $0xc] sm:$0xf]
    %v91 = vld [vmem:[%s1 + $0x10] sm:$0xf]
    %v92 = vld [vmem:[%s1 + $0x14] sm:$0xf]
    %v93 = vld [vmem:[%s1 + $0x18] sm:$0xf]
    %v94 = vld [vmem:[%s1 + $0x1c] sm:$0xf]
    %v95 = vld [vmem:[%s1 + $0x20] sm:$0xf]
    %v96 = vld [vmem:[%s1 + $0x24] sm:$0xf]
    %v97 = vld [vmem:[%s1 + $0x28] sm:$0xf]
    %v98 = vld [vmem:[%s1 + $0x2c] sm:$0xf]
    %v99 = vld [vmem:[%s2] sm:$0x1]
    %v101 = vperm.slane %v99, 0
    %v167 = vunpack.c.l.b16 %v23
    %v168 = vunpack.c.l.b16 %v24
    %v169 = vunpack.c.l.b16 %v25
    %v170 = vunpack.c.l.b16 %v26
    %v171 = vunpack.c.l.b16 %v27
    %v172 = vunpack.c.l.b16 %v28
    %v173 = vunpack.c.l.b16 %v29
    %v174 = vunpack.c.l.b16 %v30
    %v175 = vunpack.c.l.b16 %v31
    %v176 = vunpack.c.l.b16 %v32
    %v177 = vunpack.c.l.b16 %v33
    %v178 = vunpack.c.l.b16 %v34
    %v179 = vunpack.c.l.b16 %v35
    %v180 = vunpack.c.l.b16 %v36
    %v181 = vunpack.c.l.b16 %v37
    %v182 = vunpack.c.l.b16 %v38
    %v183 = vunpack.c.l.b16 %v39
    %v184 = vunpack.c.l.b16 %v40
    %v185 = vunpack.c.l.b16 %v41
    %v186 = vunpack.c.l.b16 %v42
    %v187 = vunpack.c.l.b16 %v43
    %v188 = vunpack.c.l.b16 %v44
    %v189 = vunpack.c.l.b16 %v45
    %v190 = vunpack.c.l.b16 %v46
    %v191 = vunpack.c.l.b16 %v47
    %v192 = vunpack.c.l.b16 %v48
    %v193 = vunpack.c.l.b16 %v49
    %v194 = vunpack.c.l.b16 %v50
    %v195 = vunpack.c.l.b16 %v51
    %v196 = vunpack.c.l.b16 %v52
    %v197 = vunpack.c.l.b16 %v53
    %v198 = vunpack.c.l.b16 %v54
    %v199 = vunpack.c.l.b16 %v55
    %v200 = vunpack.c.l.b16 %v56
    %v201 = vunpack.c.l.b16 %v57
    %v202 = vunpack.c.l.b16 %v58
    %v203 = vunpack.c.l.b16 %v59
    %v204 = vunpack.c.l.b16 %v60
    %v205 = vunpack.c.l.b16 %v61
    %v206 = vunpack.c.l.b16 %v62
    %v207 = vunpack.c.l.b16 %v63
    %v208 = vunpack.c.l.b16 %v64
    %v209 = vunpack.c.l.b16 %v65
    %v210 = vunpack.c.l.b16 %v66
    %v211 = vunpack.c.l.b16 %v67
    %v212 = vunpack.c.l.b16 %v68
    %v213 = vunpack.c.l.b16 %v69
    %v214 = vunpack.c.l.b16 %v70
    %v215 = vunpack.c.l.b16 %v71
    %v216 = vunpack.c.l.b16 %v72
    %v217 = vunpack.c.l.b16 %v73
    %v218 = vunpack.c.l.b16 %v74
    %v219 = vunpack.c.l.b16 %v75
    %v220 = vunpack.c.l.b16 %v76
    %v221 = vunpack.c.l.b16 %v77
    %v222 = vunpack.c.l.b16 %v78
    %v223 = vunpack.c.l.b16 %v79
    %v224 = vunpack.c.l.b16 %v80
    %v225 = vunpack.c.l.b16 %v81
    %v226 = vunpack.c.l.b16 %v82
    %v227 = vunpack.c.l.b16 %v83
    %v228 = vunpack.c.l.b16 %v84
    %v229 = vunpack.c.l.b16 %v85
    %v230 = vunpack.c.l.b16 %v86
    %v231 = vpack.c.b16 %v168, %v167
    %v232 = vpack.c.b16 %v170, %v169
    %v233 = vpack.c.b16 %v172, %v171
    %v234 = vpack.c.b16 %v174, %v173
    %v235 = vpack.c.b16 %v176, %v175
    %v236 = vpack.c.b16 %v178, %v177
    %v237 = vpack.c.b16 %v180, %v179
    %v238 = vpack.c.b16 %v182, %v181
    %v239 = vpack.c.b16 %v184, %v183
    %v240 = vpack.c.b16 %v186, %v185
    %v241 = vpack.c.b16 %v188, %v187
    %v242 = vpack.c.b16 %v190, %v189
    %v243 = vpack.c.b16 %v192, %v191
    %v244 = vpack.c.b16 %v194, %v193
    %v245 = vpack.c.b16 %v196, %v195
    %v246 = vpack.c.b16 %v198, %v197
    %v247 = vpack.c.b16 %v200, %v199
    %v248 = vpack.c.b16 %v202, %v201
    %v249 = vpack.c.b16 %v204, %v203
    %v250 = vpack.c.b16 %v206, %v205
    %v251 = vpack.c.b16 %v208, %v207
    %v252 = vpack.c.b16 %v210, %v209
    %v253 = vpack.c.b16 %v212, %v211
    %v254 = vpack.c.b16 %v214, %v213
    %v255 = vpack.c.b16 %v216, %v215
    %v256 = vpack.c.b16 %v218, %v217
    %v257 = vpack.c.b16 %v220, %v219
    %v258 = vpack.c.b16 %v222, %v221
    %v259 = vpack.c.b16 %v224, %v223
    %v260 = vpack.c.b16 %v226, %v225
    %v261 = vpack.c.b16 %v228, %v227
    %v262 = vpack.c.b16 %v230, %v229
    %v275 = vunpack.c.l.b16 %v87
    %v276 = vunpack.c.l.b16 %v88
    %v277 = vunpack.c.l.b16 %v89
    %v278 = vunpack.c.l.b16 %v90
    %v279 = vunpack.c.l.b16 %v91
    %v280 = vunpack.c.l.b16 %v92
    %v281 = vunpack.c.l.b16 %v93
    %v282 = vunpack.c.l.b16 %v94
    %v283 = vunpack.c.l.b16 %v95
    %v284 = vunpack.c.l.b16 %v96
    %v285 = vunpack.c.l.b16 %v97
    %v286 = vunpack.c.l.b16 %v98
    %v287 = vpack.c.b16 %v276, %v275
    %v288 = vpack.c.b16 %v278, %v277
    %v289 = vpack.c.b16 %v280, %v279
    %v290 = vpack.c.b16 %v282, %v281
    %v291 = vpack.c.b16 %v284, %v283
    %v292 = vpack.c.b16 %v286, %v285
    %vm299 = vcmask 785408
    %v301 = vsel %vm299, %v231, 0
    %v304 = vsel %vm299, %v232, 0
    %v307 = vsel %vm299, %v233, 0
    %v310 = vsel %vm299, %v234, 0
    %v313 = vsel %vm299, %v235, 0
    %v316 = vsel %vm299, %v236, 0
    %v319 = vsel %vm299, %v237, 0
    %v322 = vsel %vm299, %v238, 0
    %v325 = vsel %vm299, %v239, 0
    %v328 = vsel %vm299, %v240, 0
    %v331 = vsel %vm299, %v241, 0
    %v334 = vsel %vm299, %v242, 0
    %v337 = vsel %vm299, %v243, 0
    %v340 = vsel %vm299, %v244, 0
    %v343 = vsel %vm299, %v245, 0
    %v346 = vsel %vm299, %v246, 0
    %v349 = vsel %vm299, %v247, 0
    %v352 = vsel %vm299, %v248, 0
    %v355 = vsel %vm299, %v249, 0
    %v358 = vsel %vm299, %v250, 0
    %v361 = vsel %vm299, %v251, 0
    %v364 = vsel %vm299, %v252, 0
    %v367 = vsel %vm299, %v253, 0
    %v370 = vsel %vm299, %v254, 0
    %v373 = vsel %vm299, %v255, 0
    %v376 = vsel %vm299, %v256, 0
    %v379 = vsel %vm299, %v257, 0
    %v382 = vsel %vm299, %v258, 0
    %v385 = vsel %vm299, %v259, 0
    %v388 = vsel %vm299, %v260, 0
    %v391 = vsel %vm299, %v261, 0
    %v394 = vsel %vm299, %v262, 0
    %396 = vmatpush.bf16.msra.mxu0 0
    %397 = vmatpush.bf16.msra.mxu0 0
    %398 = vmatpush.bf16.msra.mxu0 %v292
    %399 = vmatpush.bf16.msra.mxu0 %v291
    %400 = vmatpush.bf16.msra.mxu0 %v290
    %401 = vmatpush.bf16.msra.mxu0 %v289
    %402 = vmatpush.bf16.msra.mxu0 %v288
    %403 = vmatpush.bf16.msra.mxu0 %v287
    %404 = vmatmul.bf16.gmra.mxu0 %v301
    %v405 = vpop.f32.mrf.mxu0
    %v406 = vadd.f32 %v101, %v405
    %v407 = vpop.f32.mrf.mxu0
    %v408 = vadd.f32 %v101, %v407
    %409 = vmatmul.bf16.gmra.mxu0 %v304
    %v410 = vpop.f32.mrf.mxu0
    %v411 = vadd.f32 %v101, %v410
    %v412 = vpop.f32.mrf.mxu0
    %v413 = vadd.f32 %v101, %v412
    %414 = vmatmul.bf16.gmra.mxu0 %v307
    %v415 = vpop.f32.mrf.mxu0
    %v416 = vadd.f32 %v101, %v415
    %v417 = vpop.f32.mrf.mxu0
    %v418 = vadd.f32 %v101, %v417
    %419 = vmatmul.bf16.gmra.mxu0 %v310
    %v420 = vpop.f32.mrf.mxu0
    %v421 = vadd.f32 %v101, %v420
    %v422 = vpop.f32.mrf.mxu0
    %v423 = vadd.f32 %v101, %v422
    %424 = vmatmul.bf16.gmra.mxu0 %v313
    %v425 = vpop.f32.mrf.mxu0
    %v426 = vadd.f32 %v101, %v425
    %v427 = vpop.f32.mrf.mxu0
    %v428 = vadd.f32 %v101, %v427
    %429 = vmatmul.bf16.gmra.mxu0 %v316
    %v430 = vpop.f32.mrf.mxu0
    %v431 = vadd.f32 %v101, %v430
    %v432 = vpop.f32.mrf.mxu0
    %v433 = vadd.f32 %v101, %v432
    %434 = vmatmul.bf16.gmra.mxu0 %v319
    %v435 = vpop.f32.mrf.mxu0
    %v436 = vadd.f32 %v101, %v435
    %v437 = vpop.f32.mrf.mxu0
    %v438 = vadd.f32 %v101, %v437
    %439 = vmatmul.bf16.gmra.mxu0 %v322
    %v440 = vpop.f32.mrf.mxu0
    %v441 = vadd.f32 %v101, %v440
    %v442 = vpop.f32.mrf.mxu0
    %v443 = vadd.f32 %v101, %v442
    %444 = vmatmul.bf16.gmra.mxu0 %v325
    %v445 = vpop.f32.mrf.mxu0
    %v446 = vadd.f32 %v101, %v445
    %v447 = vpop.f32.mrf.mxu0
    %v448 = vadd.f32 %v101, %v447
    %449 = vmatmul.bf16.gmra.mxu0 %v328
    %v450 = vpop.f32.mrf.mxu0
    %v451 = vadd.f32 %v101, %v450
    %v452 = vpop.f32.mrf.mxu0
    %v453 = vadd.f32 %v101, %v452
    %454 = vmatmul.bf16.gmra.mxu0 %v331
    %v455 = vpop.f32.mrf.mxu0
    %v456 = vadd.f32 %v101, %v455
    %v457 = vpop.f32.mrf.mxu0
    %v458 = vadd.f32 %v101, %v457
    %459 = vmatmul.bf16.gmra.mxu0 %v334
    %v460 = vpop.f32.mrf.mxu0
    %v461 = vadd.f32 %v101, %v460
    %v462 = vpop.f32.mrf.mxu0
    %v463 = vadd.f32 %v101, %v462
    %464 = vmatmul.bf16.gmra.mxu0 %v337
    %v465 = vpop.f32.mrf.mxu0
    %v466 = vadd.f32 %v101, %v465
    %v467 = vpop.f32.mrf.mxu0
    %v468 = vadd.f32 %v101, %v467
    %469 = vmatmul.bf16.gmra.mxu0 %v340
    %v470 = vpop.f32.mrf.mxu0
    %v471 = vadd.f32 %v101, %v470
    %v472 = vpop.f32.mrf.mxu0
    %v473 = vadd.f32 %v101, %v472
    %474 = vmatmul.bf16.gmra.mxu0 %v343
    %v475 = vpop.f32.mrf.mxu0
    %v476 = vadd.f32 %v101, %v475
    %v477 = vpop.f32.mrf.mxu0
    %v478 = vadd.f32 %v101, %v477
    %479 = vmatmul.bf16.gmra.mxu0 %v346
    %v480 = vpop.f32.mrf.mxu0
    %v481 = vadd.f32 %v101, %v480
    %v482 = vpop.f32.mrf.mxu0
    %v483 = vadd.f32 %v101, %v482
    %484 = vmatmul.bf16.gmra.mxu0 %v349
    %v485 = vpop.f32.mrf.mxu0
    %v486 = vadd.f32 %v101, %v485
    %v487 = vpop.f32.mrf.mxu0
    %v488 = vadd.f32 %v101, %v487
    %489 = vmatmul.bf16.gmra.mxu0 %v352
    %v490 = vpop.f32.mrf.mxu0
    %v491 = vadd.f32 %v101, %v490
    %v492 = vpop.f32.mrf.mxu0
    %v493 = vadd.f32 %v101, %v492
    %494 = vmatmul.bf16.gmra.mxu0 %v355
    %v495 = vpop.f32.mrf.mxu0
    %v496 = vadd.f32 %v101, %v495
    %v497 = vpop.f32.mrf.mxu0
    %v498 = vadd.f32 %v101, %v497
    %499 = vmatmul.bf16.gmra.mxu0 %v358
    %v500 = vpop.f32.mrf.mxu0
    %v501 = vadd.f32 %v101, %v500
    %v502 = vpop.f32.mrf.mxu0
    %v503 = vadd.f32 %v101, %v502
    %504 = vmatmul.bf16.gmra.mxu0 %v361
    %v505 = vpop.f32.mrf.mxu0
    %v506 = vadd.f32 %v101, %v505
    %v507 = vpop.f32.mrf.mxu0
    %v508 = vadd.f32 %v101, %v507
    %509 = vmatmul.bf16.gmra.mxu0 %v364
    %v510 = vpop.f32.mrf.mxu0
    %v511 = vadd.f32 %v101, %v510
    %v512 = vpop.f32.mrf.mxu0
    %v513 = vadd.f32 %v101, %v512
    %514 = vmatmul.bf16.gmra.mxu0 %v367
    %v515 = vpop.f32.mrf.mxu0
    %v516 = vadd.f32 %v101, %v515
    %v517 = vpop.f32.mrf.mxu0
    %v518 = vadd.f32 %v101, %v517
    %519 = vmatmul.bf16.gmra.mxu0 %v370
    %v520 = vpop.f32.mrf.mxu0
    %v521 = vadd.f32 %v101, %v520
    %v522 = vpop.f32.mrf.mxu0
    %v523 = vadd.f32 %v101, %v522
    %524 = vmatmul.bf16.gmra.mxu0 %v373
    %v525 = vpop.f32.mrf.mxu0
    %v526 = vadd.f32 %v101, %v525
    %v527 = vpop.f32.mrf.mxu0
    %v528 = vadd.f32 %v101, %v527
    %529 = vmatmul.bf16.gmra.mxu0 %v376
    %v530 = vpop.f32.mrf.mxu0
    %v531 = vadd.f32 %v101, %v530
    %v532 = vpop.f32.mrf.mxu0
    %v533 = vadd.f32 %v101, %v532
    %534 = vmatmul.bf16.gmra.mxu0 %v379
    %v535 = vpop.f32.mrf.mxu0
    %v536 = vadd.f32 %v101, %v535
    %v537 = vpop.f32.mrf.mxu0
    %v538 = vadd.f32 %v101, %v537
    %539 = vmatmul.bf16.gmra.mxu0 %v382
    %v540 = vpop.f32.mrf.mxu0
    %v541 = vadd.f32 %v101, %v540
    %v542 = vpop.f32.mrf.mxu0
    %v543 = vadd.f32 %v101, %v542
    %544 = vmatmul.bf16.gmra.mxu0 %v385
    %v545 = vpop.f32.mrf.mxu0
    %v546 = vadd.f32 %v101, %v545
    %v547 = vpop.f32.mrf.mxu0
    %v548 = vadd.f32 %v101, %v547
    %549 = vmatmul.bf16.gmra.mxu0 %v388
    %v550 = vpop.f32.mrf.mxu0
    %v551 = vadd.f32 %v101, %v550
    %v552 = vpop.f32.mrf.mxu0
    %v553 = vadd.f32 %v101, %v552
    %554 = vmatmul.bf16.gmra.mxu0 %v391
    %v555 = vpop.f32.mrf.mxu0
    %v556 = vadd.f32 %v101, %v555
    %v557 = vpop.f32.mrf.mxu0
    %v558 = vadd.f32 %v101, %v557
    %559 = vmatmul.bf16.gmra.mxu0 %v394
    %v560 = vpop.f32.mrf.mxu0
    %v561 = vadd.f32 %v101, %v560
    %v562 = vpop.f32.mrf.mxu0
    %v563 = vadd.f32 %v101, %v562
    %564 = vdwg.mxu0
    %v565 = vmax.f32 %v406, 0.0
    %v566 = vmax.f32 %v408, 0.0
    %v567 = vmax.f32 %v411, 0.0
    %v568 = vmax.f32 %v413, 0.0
    %v569 = vmax.f32 %v416, 0.0
    %v570 = vmax.f32 %v418, 0.0
    %v571 = vmax.f32 %v421, 0.0
    %v572 = vmax.f32 %v423, 0.0
    %v573 = vmax.f32 %v426, 0.0
    %v574 = vmax.f32 %v428, 0.0
    %v575 = vmax.f32 %v431, 0.0
    %v576 = vmax.f32 %v433, 0.0
    %v577 = vmax.f32 %v436, 0.0
    %v578 = vmax.f32 %v438, 0.0
    %v579 = vmax.f32 %v441, 0.0
    %v580 = vmax.f32 %v443, 0.0
    %v581 = vmax.f32 %v446, 0.0
    %v582 = vmax.f32 %v448, 0.0
    %v583 = vmax.f32 %v451, 0.0
    %v584 = vmax.f32 %v453, 0.0
    %v585 = vmax.f32 %v456, 0.0
    %v586 = vmax.f32 %v458, 0.0
    %v587 = vmax.f32 %v461, 0.0
    %v588 = vmax.f32 %v463, 0.0
    %v589 = vmax.f32 %v466, 0.0
    %v590 = vmax.f32 %v468, 0.0
    %v591 = vmax.f32 %v471, 0.0
    %v592 = vmax.f32 %v473, 0.0
    %v593 = vmax.f32 %v476, 0.0
    %v594 = vmax.f32 %v478, 0.0
    %v595 = vmax.f32 %v481, 0.0
    %v596 = vmax.f32 %v483, 0.0
    %v597 = vmax.f32 %v486, 0.0
    %v598 = vmax.f32 %v488, 0.0
    %v599 = vmax.f32 %v491, 0.0
    %v600 = vmax.f32 %v493, 0.0
    %v601 = vmax.f32 %v496, 0.0
    %v602 = vmax.f32 %v498, 0.0
    %v603 = vmax.f32 %v501, 0.0
    %v604 = vmax.f32 %v503, 0.0
    %v605 = vmax.f32 %v506, 0.0
    %v606 = vmax.f32 %v508, 0.0
    %v607 = vmax.f32 %v511, 0.0
    %v608 = vmax.f32 %v513, 0.0
    %v609 = vmax.f32 %v516, 0.0
    %v610 = vmax.f32 %v518, 0.0
    %v611 = vmax.f32 %v521, 0.0
    %v612 = vmax.f32 %v523, 0.0
    %v613 = vmax.f32 %v526, 0.0
    %v614 = vmax.f32 %v528, 0.0
    %v615 = vmax.f32 %v531, 0.0
    %v616 = vmax.f32 %v533, 0.0
    %v617 = vmax.f32 %v536, 0.0
    %v618 = vmax.f32 %v538, 0.0
    %v619 = vmax.f32 %v541, 0.0
    %v620 = vmax.f32 %v543, 0.0
    %v621 = vmax.f32 %v546, 0.0
    %v622 = vmax.f32 %v548, 0.0
    %v623 = vmax.f32 %v551, 0.0
    %v624 = vmax.f32 %v553, 0.0
    %v625 = vmax.f32 %v556, 0.0
    %v626 = vmax.f32 %v558, 0.0
    %v627 = vmax.f32 %v561, 0.0
    %v628 = vmax.f32 %v563, 0.0
    %v629 = vld [vmem:[%s3] sm:$0x1]
    %s630 = sld [smem:[#allocation2]]
    %v631 = vstv %s630
    %vm632 = vcmask 261120
    %v634 = vsel %vm632, %v629, 0
    %v637 = vsel %vm632, %v565, 0
    %v640 = vsel %vm632, %v566, 0
    %v643 = vsel %vm632, %v567, 0
    %v646 = vsel %vm632, %v568, 0
    %v649 = vsel %vm632, %v569, 0
    %v652 = vsel %vm632, %v570, 0
    %v655 = vsel %vm632, %v571, 0
    %v658 = vsel %vm632, %v572, 0
    %v661 = vsel %vm632, %v573, 0
    %v664 = vsel %vm632, %v574, 0
    %v667 = vsel %vm632, %v575, 0
    %v670 = vsel %vm632, %v576, 0
    %v673 = vsel %vm632, %v577, 0
    %v676 = vsel %vm632, %v578, 0
    %v679 = vsel %vm632, %v579, 0
    %v682 = vsel %vm632, %v580, 0
    %v685 = vsel %vm632, %v581, 0
    %v688 = vsel %vm632, %v582, 0
    %v691 = vsel %vm632, %v583, 0
    %v694 = vsel %vm632, %v584, 0
    %v697 = vsel %vm632, %v585, 0
    %v700 = vsel %vm632, %v586, 0
    %v703 = vsel %vm632, %v587, 0
    %v706 = vsel %vm632, %v588, 0
    %v709 = vsel %vm632, %v589, 0
    %v712 = vsel %vm632, %v590, 0
    %v715 = vsel %vm632, %v591, 0
    %v718 = vsel %vm632, %v592, 0
    %v721 = vsel %vm632, %v593, 0
    %v724 = vsel %vm632, %v594, 0
    %v727 = vsel %vm632, %v595, 0
    %v730 = vsel %vm632, %v596, 0
    %v733 = vsel %vm632, %v597, 0
    %v736 = vsel %vm632, %v598, 0
    %v739 = vsel %vm632, %v599, 0
    %v742 = vsel %vm632, %v600, 0
    %v745 = vsel %vm632, %v601, 0
    %v748 = vsel %vm632, %v602, 0
    %v751 = vsel %vm632, %v603, 0
    %v754 = vsel %vm632, %v604, 0
    %v757 = vsel %vm632, %v605, 0
    %v760 = vsel %vm632, %v606, 0
    %v763 = vsel %vm632, %v607, 0
    %v766 = vsel %vm632, %v608, 0
    %v769 = vsel %vm632, %v609, 0
    %v772 = vsel %vm632, %v610, 0
    %v775 = vsel %vm632, %v611, 0
    %v778 = vsel %vm632, %v612, 0
    %v781 = vsel %vm632, %v613, 0
    %v784 = vsel %vm632, %v614, 0
    %v787 = vsel %vm632, %v615, 0
    %v790 = vsel %vm632, %v616, 0
    %v793 = vsel %vm632, %v617, 0
    %v796 = vsel %vm632, %v618, 0
    %v799 = vsel %vm632, %v619, 0
    %v802 = vsel %vm632, %v620, 0
    %v805 = vsel %vm632, %v621, 0
    %v808 = vsel %vm632, %v622, 0
    %v811 = vsel %vm632, %v623, 0
    %v814 = vsel %vm632, %v624, 0
    %v817 = vsel %vm632, %v625, 0
    %v820 = vsel %vm632, %v626, 0
    %v823 = vsel %vm632, %v627, 0
    %v826 = vsel %vm632, %v628, 0
    %828 = vmatpush.xpose.msra.mxu0 %v682
    %829 = vmatpush.xpose.msra.mxu0 %v679
    %830 = vmatpush.xpose.msra.mxu0 %v676
    %831 = vmatpush.xpose.msra.mxu0 %v673
    %832 = vmatpush.xpose.msra.mxu0 %v670
    %833 = vmatpush.xpose.msra.mxu0 %v667
    %834 = vmatpush.xpose.msra.mxu0 %v664
    %835 = vmatpush.xpose.msra.mxu0 %v661
    %836 = vmatpush.xpose.msra.mxu0 %v658
    %837 = vmatpush.xpose.msra.mxu0 %v655
    %838 = vmatpush.xpose.msra.mxu0 %v652
    %839 = vmatpush.xpose.msra.mxu0 %v649
    %840 = vmatpush.xpose.msra.mxu0 %v646
    %841 = vmatpush.xpose.msra.mxu0 %v643
    %842 = vmatpush.xpose.msra.mxu0 %v640
    %843 = vmatpush.xpose.msra.mxu0 %v637
    %844 = vmatmul.f32.gmra.mxu0 %v634
    %v845 = vpop.f32.mrf.mxu0
    %v846 = vadd.f32 %v631, %v845
    %847 = vdwg.mxu0
    %848 = vmatpush.xpose.msra.mxu0 %v730
    %849 = vmatpush.xpose.msra.mxu0 %v727
    %850 = vmatpush.xpose.msra.mxu0 %v724
    %851 = vmatpush.xpose.msra.mxu0 %v721
    %852 = vmatpush.xpose.msra.mxu0 %v718
    %853 = vmatpush.xpose.msra.mxu0 %v715
    %854 = vmatpush.xpose.msra.mxu0 %v712
    %855 = vmatpush.xpose.msra.mxu0 %v709
    %856 = vmatpush.xpose.msra.mxu0 %v706
    %857 = vmatpush.xpose.msra.mxu0 %v703
    %858 = vmatpush.xpose.msra.mxu0 %v700
    %859 = vmatpush.xpose.msra.mxu0 %v697
    %860 = vmatpush.xpose.msra.mxu0 %v694
    %861 = vmatpush.xpose.msra.mxu0 %v691
    %862 = vmatpush.xpose.msra.mxu0 %v688
    %863 = vmatpush.xpose.msra.mxu0 %v685
    %864 = vmatmul.f32.gmra.mxu0 %v634
    %v865 = vpop.f32.mrf.mxu0
    %v866 = vadd.f32 %v631, %v865
    %867 = vdwg.mxu0
    %868 = vmatpush.xpose.msra.mxu0 %v778
    %869 = vmatpush.xpose.msra.mxu0 %v775
    %870 = vmatpush.xpose.msra.mxu0 %v772
    %871 = vmatpush.xpose.msra.mxu0 %v769
    %872 = vmatpush.xpose.msra.mxu0 %v766
    %873 = vmatpush.xpose.msra.mxu0 %v763
    %874 = vmatpush.xpose.msra.mxu0 %v760
    %875 = vmatpush.xpose.msra.mxu0 %v757
    %876 = vmatpush.xpose.msra.mxu0 %v754
    %877 = vmatpush.xpose.msra.mxu0 %v751
    %878 = vmatpush.xpose.msra.mxu0 %v748
    %879 = vmatpush.xpose.msra.mxu0 %v745
    %880 = vmatpush.xpose.msra.mxu0 %v742
    %881 = vmatpush.xpose.msra.mxu0 %v739
    %882 = vmatpush.xpose.msra.mxu0 %v736
    %883 = vmatpush.xpose.msra.mxu0 %v733
    %884 = vmatmul.f32.gmra.mxu0 %v634
    %v885 = vpop.f32.mrf.mxu0
    %v886 = vadd.f32 %v631, %v885
    %887 = vdwg.mxu0
    %888 = vmatpush.xpose.msra.mxu0 %v826
    %889 = vmatpush.xpose.msra.mxu0 %v823
    %890 = vmatpush.xpose.msra.mxu0 %v820
    %891 = vmatpush.xpose.msra.mxu0 %v817
    %892 = vmatpush.xpose.msra.mxu0 %v814
    %893 = vmatpush.xpose.msra.mxu0 %v811
    %894 = vmatpush.xpose.msra.mxu0 %v808
    %895 = vmatpush.xpose.msra.mxu0 %v805
    %896 = vmatpush.xpose.msra.mxu0 %v802
    %897 = vmatpush.xpose.msra.mxu0 %v799
    %898 = vmatpush.xpose.msra.mxu0 %v796
    %899 = vmatpush.xpose.msra.mxu0 %v793
    %900 = vmatpush.xpose.msra.mxu0 %v790
    %901 = vmatpush.xpose.msra.mxu0 %v787
    %902 = vmatpush.xpose.msra.mxu0 %v784
    %903 = vmatpush.xpose.msra.mxu0 %v781
    %904 = vmatmul.f32.gmra.mxu0 %v634
    %v905 = vpop.f32.mrf.mxu0
    %v906 = vadd.f32 %v631, %v905
    %907 = vdwg.mxu0
    %v912 = vrot.slane %v866, 7
    %v913 = vrot.slane %v886, 6
    %v914 = vrot.slane %v906, 5
    %vm915 = vcmask 1040384
    %v916 = vsel %vm915, %v846, %v912
    %vm917 = vcmask 1042434
    %v918 = vsel %vm917, %v913, %v914
    %vm919 = vcmask 1041408
    %v920 = vsel %vm919, %v916, %v918
    %v922 = vlaneseq
    %vm923 = vcmp.ge.s32.totalorder %v922, 0
    %vm924 = vcmp.lt.s32.totalorder %v922, 512
    %vm925 = vmand %vm923, %vm924
    %926 = vst.msk [vmem:[#allocation3] sm:$0xf] %vm925, %v920
    // Predicated region
    $region22: #{tpu_custom_call.1} parent=1 // pred_check
      _
    $region23: #{tpu_custom_call.1} parent=1 // pred_check_branch
      %928 = sbr.rel (0) target = $region25
    $region24: #{tpu_custom_call.1} parent=1 // pred_region
      %930 = vsyncadd [#allocation4], 0
      %s932 = sshll.u32 [#allocation3], 4
      %s933 = int_to_ptr.vmem [resolvable:$true] %s932
      %s934 = sshll.u32 %s5, 4
      %s935 = int_to_ptr.hbm [resolvable:$true] %s934
      %937 = dma.vmem_to_hbm [thread:$0]  %s933, 64, %s935, [#allocation4]
    $region25: #{tpu_custom_call.1} parent=1 // pred_fallthru
      _
    // Predicated region
    $region26: #{tpu_custom_call.1} parent=1 // pred_check
      _
    $region27: #{tpu_custom_call.1} parent=1 // pred_check_branch
      %939 = sbr.rel (0) target = $region29
    $region28: #{tpu_custom_call.1} parent=1 // pred_region
      %941 = dma.done [#allocation4], 64
    $region29: #{tpu_custom_call.1} parent=1 // pred_fallthru
      _
    %942 = vsyncpa [#allocation4], 1

</llo_original>
